<compile_context>
chip_gen: v7x
topology: tpu7x:2x2x1
jax: 0.10.0
libtpu: 0.0.40
codegen_flags: <defaults>
</compile_context>

<pallas_src>
import jax
import jax.numpy as jnp
from jax.experimental import pallas as pl
from jax.experimental.pallas import tpu as pltpu

EPS = 1e-5
DIMS = [256, 128, 64, 32, 4]        # fc0 .. fc3
BN_FEATS = (128, 64, 32)            # Norm128, Norm64, Norm32


def _make_kernel(n_valid: int, n_rows: int):
    """Build the fused MLP kernel for a (n_rows, 256) VMEM-resident input.

    n_valid  -- number of real batch rows (BN statistics use only these).
    n_rows   -- padded row count (multiple of 8) actually processed.
    """
    use_slice = n_valid != n_rows
    inv_n = 1.0 / float(n_valid)

    def kernel(x_ref,
               w0, b0, w1, b1, w2, b2, w3, b3,
               g128, be128, g64, be64, g32, be32,
               o_ref):

        def dense(h, w_ref, b_ref):
            # bf16 x bf16 -> f32 accumulation on the MXU.
            return jnp.dot(h.astype(jnp.bfloat16), w_ref[...],
                           preferred_element_type=jnp.float32) + b_ref[...]

        def bn_relu(h, gamma_ref, beta_ref):
            # Training-mode BatchNorm1d over the valid batch rows only,
            # folded into a single scale/shift, then ReLU.
            hv = h[:n_valid] if use_slice else h
            s1 = jnp.sum(hv, axis=0, keepdims=True)
            s2 = jnp.sum(hv * hv, axis=0, keepdims=True)
            mu = s1 * inv_n
            var = s2 * inv_n - mu * mu           # biased variance, one pass
            scale = gamma_ref[...] * jax.lax.rsqrt(var + EPS)
            shift = beta_ref[...] - mu * scale
            return jnp.maximum(h * scale + shift, 0.0)

        x = x_ref[...]                            # (n_rows, 256) bf16
        h = bn_relu(dense(x, w0, b0), g128, be128)
        h = bn_relu(dense(h, w1, b1), g64, be64)
        h = bn_relu(dense(h, w2, b2), g32, be32)
        o_ref[...] = dense(h, w3, b3).astype(o_ref.dtype)

    return kernel


def init_params(key):
    """Deterministic synthetic parameters (PyTorch nn.Linear default init shapes)."""
    fc = []
    keys = jax.random.split(key, len(DIMS) - 1)
    for i in range(len(DIMS) - 1):
        fin, fout = DIMS[i], DIMS[i + 1]
        bound = 1.0 / (float(fin) ** 0.5)
        kw, kb = jax.random.split(keys[i])
        # Stored as (in, out) = PyTorch weight transposed, bf16 for the MXU.
        w = jax.random.uniform(kw, (fin, fout), jnp.float32,
                               -bound, bound).astype(jnp.bfloat16)
        b = jax.random.uniform(kb, (1, fout), jnp.float32, -bound, bound)
        fc += [w, b]

    # BatchNorm affine params (gamma=1, beta=0 defaults), kept in f32.
    bn = []
    for nf in BN_FEATS:
        bn += [jnp.ones((1, nf), jnp.float32), jnp.zeros((1, nf), jnp.float32)]
    return fc, bn


def classifiar_dm(x, fc_params, bn_params):
    """x: (B, 256) (or any shape flattening to (B, 256)). Returns (B, 4) f32."""
    if x.ndim > 2:
        x = x.reshape(x.shape[0], -1)
    B = x.shape[0]
    assert x.shape[1] == 256

    # Pad the batch to a sublane multiple; padded rows are zeros and are
    # excluded from BN statistics inside the kernel, then sliced off here.
    B_pad = max(8, ((B + 7) // 8) * 8)
    x_p = jnp.zeros((B_pad, 256), jnp.bfloat16).at[:B].set(x.astype(jnp.bfloat16))

    vmem_spec = pl.BlockSpec(memory_space=pltpu.MemorySpace.VMEM)
    n_in = 1 + len(fc_params) + len(bn_params)

    out = pl.pallas_call(
        _make_kernel(B, B_pad),
        out_shape=jax.ShapeDtypeStruct((B_pad, 4), jnp.float32),
        in_specs=[vmem_spec] * n_in,
        out_specs=vmem_spec,
    )(x_p, *fc_params, *bn_params)
    # TODO(synk): for very large B, tile over the batch with a grid and a
    # two-phase sum/sumsq BN reduction (and a 2-core split on v7x) to overlap
    # the x DMA with compute; unnecessary at the small batches exercised here.
    return out[:B]


if __name__ == "__main__":
    key = jax.random.PRNGKey(0)
    kx, kp = jax.random.split(key)

    # fc0 expects 256 input features.
    x = jax.random.normal(kx, (2, 256), jnp.float32)
    fc_params, bn_params = init_params(kp)

    y = classifiar_dm(x, fc_params, bn_params)
    jax.block_until_ready(y)

    assert y.shape == (2, 4)
    assert bool(jnp.all(jnp.isfinite(y)))
    print("KERNEL_OK")
</pallas_src>

<mosaic_0001>
module attributes {stable_mosaic.version = 11 : i64} {
  func.func @kernel(%arg0: memref<8x256xbf16, #tpu.memory_space<vmem>>, %arg1: memref<256x128xbf16, #tpu.memory_space<vmem>>, %arg2: memref<1x128xf32, #tpu.memory_space<vmem>>, %arg3: memref<128x64xbf16, #tpu.memory_space<vmem>>, %arg4: memref<1x64xf32, #tpu.memory_space<vmem>>, %arg5: memref<64x32xbf16, #tpu.memory_space<vmem>>, %arg6: memref<1x32xf32, #tpu.memory_space<vmem>>, %arg7: memref<32x4xbf16, #tpu.memory_space<vmem>>, %arg8: memref<1x4xf32, #tpu.memory_space<vmem>>, %arg9: memref<1x128xf32, #tpu.memory_space<vmem>>, %arg10: memref<1x128xf32, #tpu.memory_space<vmem>>, %arg11: memref<1x64xf32, #tpu.memory_space<vmem>>, %arg12: memref<1x64xf32, #tpu.memory_space<vmem>>, %arg13: memref<1x32xf32, #tpu.memory_space<vmem>>, %arg14: memref<1x32xf32, #tpu.memory_space<vmem>>, %arg15: memref<8x4xf32, #tpu.memory_space<vmem>>) attributes {dimension_semantics = [], scalar_prefetch = 0 : i64, scratch_operands = 0 : i64, tpu.core_type = #tpu.core_type<tc>} {
    %c0 = arith.constant 0 : index
    %c0_0 = arith.constant 0 : index
    %0 = vector.load %arg0[%c0, %c0_0] : memref<8x256xbf16, #tpu.memory_space<vmem>>, vector<8x256xbf16>
    %c0_1 = arith.constant 0 : index
    %c0_2 = arith.constant 0 : index
    %1 = vector.load %arg1[%c0_1, %c0_2] : memref<256x128xbf16, #tpu.memory_space<vmem>>, vector<256x128xbf16>
    %cst = arith.constant dense<0.000000e+00> : vector<8x128xf32>
    %2 = tpu.matmul %0, %1, %cst {dimension_numbers = #tpu.dot_dimension_numbers<[1], [0], [0], [1], [0, 0, 1, 1], [], []>} : vector<8x256xbf16>, vector<256x128xbf16>, vector<8x128xf32> -> vector<8x128xf32>
    %c0_3 = arith.constant 0 : index
    %c0_4 = arith.constant 0 : index
    %3 = vector.load %arg2[%c0_3, %c0_4] : memref<1x128xf32, #tpu.memory_space<vmem>>, vector<1x128xf32>
    %4 = vector.broadcast %3 : vector<1x128xf32> to vector<8x128xf32>
    %5 = arith.addf %2, %4 : vector<8x128xf32>
    %6 = vector.extract_strided_slice %5 {offsets = [0, 0], sizes = [2, 128], strides = [1, 1]} : vector<8x128xf32> to vector<2x128xf32>
    %cst_5 = arith.constant dense<0.000000e+00> : vector<128xf32>
    %7 = vector.multi_reduction <add>, %6, %cst_5 [0] : vector<2x128xf32> to vector<128xf32>
    %8 = vector.shape_cast %7 : vector<128xf32> to vector<1x128xf32>
    %9 = arith.mulf %6, %6 : vector<2x128xf32>
    %cst_6 = arith.constant dense<0.000000e+00> : vector<128xf32>
    %10 = vector.multi_reduction <add>, %9, %cst_6 [0] : vector<2x128xf32> to vector<128xf32>
    %11 = vector.shape_cast %10 : vector<128xf32> to vector<1x128xf32>
    %cst_7 = arith.constant 5.000000e-01 : f32
    %12 = vector.broadcast %cst_7 : f32 to vector<1x128xf32>
    %13 = arith.mulf %8, %12 : vector<1x128xf32>
    %cst_8 = arith.constant 5.000000e-01 : f32
    %14 = vector.broadcast %cst_8 : f32 to vector<1x128xf32>
    %15 = arith.mulf %11, %14 : vector<1x128xf32>
    %16 = arith.mulf %13, %13 : vector<1x128xf32>
    %17 = arith.subf %15, %16 : vector<1x128xf32>
    %c0_9 = arith.constant 0 : index
    %c0_10 = arith.constant 0 : index
    %18 = vector.load %arg9[%c0_9, %c0_10] : memref<1x128xf32, #tpu.memory_space<vmem>>, vector<1x128xf32>
    %cst_11 = arith.constant 9.99999974E-6 : f32
    %19 = vector.broadcast %cst_11 : f32 to vector<1x128xf32>
    %20 = arith.addf %17, %19 : vector<1x128xf32>
    %21 = math.rsqrt %20 : vector<1x128xf32>
    %22 = arith.mulf %18, %21 : vector<1x128xf32>
    %c0_12 = arith.constant 0 : index
    %c0_13 = arith.constant 0 : index
    %23 = vector.load %arg10[%c0_12, %c0_13] : memref<1x128xf32, #tpu.memory_space<vmem>>, vector<1x128xf32>
    %24 = arith.mulf %13, %22 : vector<1x128xf32>
    %25 = arith.subf %23, %24 : vector<1x128xf32>
    %26 = vector.broadcast %22 : vector<1x128xf32> to vector<8x128xf32>
    %27 = arith.mulf %5, %26 : vector<8x128xf32>
    %28 = vector.broadcast %25 : vector<1x128xf32> to vector<8x128xf32>
    %29 = arith.addf %27, %28 : vector<8x128xf32>
    %cst_14 = arith.constant 0.000000e+00 : f32
    %30 = vector.broadcast %cst_14 : f32 to vector<8x128xf32>
    %31 = arith.maximumf %29, %30 : vector<8x128xf32>
    %32 = arith.truncf %31 : vector<8x128xf32> to vector<8x128xbf16>
    %c0_15 = arith.constant 0 : index
    %c0_16 = arith.constant 0 : index
    %33 = vector.load %arg3[%c0_15, %c0_16] : memref<128x64xbf16, #tpu.memory_space<vmem>>, vector<128x64xbf16>
    %cst_17 = arith.constant dense<0.000000e+00> : vector<8x64xf32>
    %34 = tpu.matmul %32, %33, %cst_17 {dimension_numbers = #tpu.dot_dimension_numbers<[1], [0], [0], [1], [0, 0, 1, 1], [], []>} : vector<8x128xbf16>, vector<128x64xbf16>, vector<8x64xf32> -> vector<8x64xf32>
    %c0_18 = arith.constant 0 : index
    %c0_19 = arith.constant 0 : index
    %35 = vector.load %arg4[%c0_18, %c0_19] : memref<1x64xf32, #tpu.memory_space<vmem>>, vector<1x64xf32>
    %36 = vector.broadcast %35 : vector<1x64xf32> to vector<8x64xf32>
    %37 = arith.addf %34, %36 : vector<8x64xf32>
    %38 = vector.extract_strided_slice %37 {offsets = [0, 0], sizes = [2, 64], strides = [1, 1]} : vector<8x64xf32> to vector<2x64xf32>
    %cst_20 = arith.constant dense<0.000000e+00> : vector<64xf32>
    %39 = vector.multi_reduction <add>, %38, %cst_20 [0] : vector<2x64xf32> to vector<64xf32>
    %40 = vector.shape_cast %39 : vector<64xf32> to vector<1x64xf32>
    %41 = arith.mulf %38, %38 : vector<2x64xf32>
    %cst_21 = arith.constant dense<0.000000e+00> : vector<64xf32>
    %42 = vector.multi_reduction <add>, %41, %cst_21 [0] : vector<2x64xf32> to vector<64xf32>
    %43 = vector.shape_cast %42 : vector<64xf32> to vector<1x64xf32>
    %cst_22 = arith.constant 5.000000e-01 : f32
    %44 = vector.broadcast %cst_22 : f32 to vector<1x64xf32>
    %45 = arith.mulf %40, %44 : vector<1x64xf32>
    %cst_23 = arith.constant 5.000000e-01 : f32
    %46 = vector.broadcast %cst_23 : f32 to vector<1x64xf32>
    %47 = arith.mulf %43, %46 : vector<1x64xf32>
    %48 = arith.mulf %45, %45 : vector<1x64xf32>
    %49 = arith.subf %47, %48 : vector<1x64xf32>
    %c0_24 = arith.constant 0 : index
    %c0_25 = arith.constant 0 : index
    %50 = vector.load %arg11[%c0_24, %c0_25] : memref<1x64xf32, #tpu.memory_space<vmem>>, vector<1x64xf32>
    %cst_26 = arith.constant 9.99999974E-6 : f32
    %51 = vector.broadcast %cst_26 : f32 to vector<1x64xf32>
    %52 = arith.addf %49, %51 : vector<1x64xf32>
    %53 = math.rsqrt %52 : vector<1x64xf32>
    %54 = arith.mulf %50, %53 : vector<1x64xf32>
    %c0_27 = arith.constant 0 : index
    %c0_28 = arith.constant 0 : index
    %55 = vector.load %arg12[%c0_27, %c0_28] : memref<1x64xf32, #tpu.memory_space<vmem>>, vector<1x64xf32>
    %56 = arith.mulf %45, %54 : vector<1x64xf32>
    %57 = arith.subf %55, %56 : vector<1x64xf32>
    %58 = vector.broadcast %54 : vector<1x64xf32> to vector<8x64xf32>
    %59 = arith.mulf %37, %58 : vector<8x64xf32>
    %60 = vector.broadcast %57 : vector<1x64xf32> to vector<8x64xf32>
    %61 = arith.addf %59, %60 : vector<8x64xf32>
    %cst_29 = arith.constant 0.000000e+00 : f32
    %62 = vector.broadcast %cst_29 : f32 to vector<8x64xf32>
    %63 = arith.maximumf %61, %62 : vector<8x64xf32>
    %64 = arith.truncf %63 : vector<8x64xf32> to vector<8x64xbf16>
    %c0_30 = arith.constant 0 : index
    %c0_31 = arith.constant 0 : index
    %65 = vector.load %arg5[%c0_30, %c0_31] : memref<64x32xbf16, #tpu.memory_space<vmem>>, vector<64x32xbf16>
    %cst_32 = arith.constant dense<0.000000e+00> : vector<8x32xf32>
    %66 = tpu.matmul %64, %65, %cst_32 {dimension_numbers = #tpu.dot_dimension_numbers<[1], [0], [0], [1], [0, 0, 1, 1], [], []>} : vector<8x64xbf16>, vector<64x32xbf16>, vector<8x32xf32> -> vector<8x32xf32>
    %c0_33 = arith.constant 0 : index
    %c0_34 = arith.constant 0 : index
    %67 = vector.load %arg6[%c0_33, %c0_34] : memref<1x32xf32, #tpu.memory_space<vmem>>, vector<1x32xf32>
    %68 = vector.broadcast %67 : vector<1x32xf32> to vector<8x32xf32>
    %69 = arith.addf %66, %68 : vector<8x32xf32>
    %70 = vector.extract_strided_slice %69 {offsets = [0, 0], sizes = [2, 32], strides = [1, 1]} : vector<8x32xf32> to vector<2x32xf32>
    %cst_35 = arith.constant dense<0.000000e+00> : vector<32xf32>
    %71 = vector.multi_reduction <add>, %70, %cst_35 [0] : vector<2x32xf32> to vector<32xf32>
    %72 = vector.shape_cast %71 : vector<32xf32> to vector<1x32xf32>
    %73 = arith.mulf %70, %70 : vector<2x32xf32>
    %cst_36 = arith.constant dense<0.000000e+00> : vector<32xf32>
    %74 = vector.multi_reduction <add>, %73, %cst_36 [0] : vector<2x32xf32> to vector<32xf32>
    %75 = vector.shape_cast %74 : vector<32xf32> to vector<1x32xf32>
    %cst_37 = arith.constant 5.000000e-01 : f32
    %76 = vector.broadcast %cst_37 : f32 to vector<1x32xf32>
    %77 = arith.mulf %72, %76 : vector<1x32xf32>
    %cst_38 = arith.constant 5.000000e-01 : f32
    %78 = vector.broadcast %cst_38 : f32 to vector<1x32xf32>
    %79 = arith.mulf %75, %78 : vector<1x32xf32>
    %80 = arith.mulf %77, %77 : vector<1x32xf32>
    %81 = arith.subf %79, %80 : vector<1x32xf32>
    %c0_39 = arith.constant 0 : index
    %c0_40 = arith.constant 0 : index
    %82 = vector.load %arg13[%c0_39, %c0_40] : memref<1x32xf32, #tpu.memory_space<vmem>>, vector<1x32xf32>
    %cst_41 = arith.constant 9.99999974E-6 : f32
    %83 = vector.broadcast %cst_41 : f32 to vector<1x32xf32>
    %84 = arith.addf %81, %83 : vector<1x32xf32>
    %85 = math.rsqrt %84 : vector<1x32xf32>
    %86 = arith.mulf %82, %85 : vector<1x32xf32>
    %c0_42 = arith.constant 0 : index
    %c0_43 = arith.constant 0 : index
    %87 = vector.load %arg14[%c0_42, %c0_43] : memref<1x32xf32, #tpu.memory_space<vmem>>, vector<1x32xf32>
    %88 = arith.mulf %77, %86 : vector<1x32xf32>
    %89 = arith.subf %87, %88 : vector<1x32xf32>
    %90 = vector.broadcast %86 : vector<1x32xf32> to vector<8x32xf32>
    %91 = arith.mulf %69, %90 : vector<8x32xf32>
    %92 = vector.broadcast %89 : vector<1x32xf32> to vector<8x32xf32>
    %93 = arith.addf %91, %92 : vector<8x32xf32>
    %cst_44 = arith.constant 0.000000e+00 : f32
    %94 = vector.broadcast %cst_44 : f32 to vector<8x32xf32>
    %95 = arith.maximumf %93, %94 : vector<8x32xf32>
    %96 = arith.truncf %95 : vector<8x32xf32> to vector<8x32xbf16>
    %c0_45 = arith.constant 0 : index
    %c0_46 = arith.constant 0 : index
    %97 = vector.load %arg7[%c0_45, %c0_46] : memref<32x4xbf16, #tpu.memory_space<vmem>>, vector<32x4xbf16>
    %cst_47 = arith.constant dense<0.000000e+00> : vector<8x4xf32>
    %98 = tpu.matmul %96, %97, %cst_47 {dimension_numbers = #tpu.dot_dimension_numbers<[1], [0], [0], [1], [0, 0, 1, 1], [], []>} : vector<8x32xbf16>, vector<32x4xbf16>, vector<8x4xf32> -> vector<8x4xf32>
    %c0_48 = arith.constant 0 : index
    %c0_49 = arith.constant 0 : index
    %99 = vector.load %arg8[%c0_48, %c0_49] : memref<1x4xf32, #tpu.memory_space<vmem>>, vector<1x4xf32>
    %100 = vector.broadcast %99 : vector<1x4xf32> to vector<8x4xf32>
    %101 = arith.addf %98, %100 : vector<8x4xf32>
    %c0_50 = arith.constant 0 : index
    %c0_51 = arith.constant 0 : index
    %102 = vector.load %arg15[%c0_50, %c0_51] : memref<8x4xf32, #tpu.memory_space<vmem>>, vector<8x4xf32>
    tpu.vector_store %arg15[%c0_50, %c0_51], %101 {strides = array<i32>} : memref<8x4xf32, #tpu.memory_space<vmem>>, vector<8x4xf32>,
    return
  }
}

</mosaic_0001>

<llo_original>
// kernel: tpu_custom_call.1
$region0: #{tpu_custom_call.1}
  #allocation0 [shape = 'u32[]', space=smem, size = 0x4, offset = 0x4, fixed_abs, tag = 'smem constant byte address 0x4 - core index']
  #allocation1 [shape = 'u32[144,128]{1,0:T(1,128)}', space=vmem, size = 0x12000, scoped, tag = 'internal scratch']
  %s0 = inlined_call_operand.hbm [shape: bf16[8,256], index: 0, kind: input, shape index: {}]
  %s1 = inlined_call_operand.vmem [shape: bf16[256,128], index: 1, kind: input, shape index: {}]
  %s2 = inlined_call_operand.vmem [shape: f32[1,128], index: 2, kind: input, shape index: {}]
  %s3 = inlined_call_operand.vmem [shape: bf16[128,64], index: 3, kind: input, shape index: {}]
  %s4 = inlined_call_operand.hbm [shape: f32[1,64], index: 4, kind: input, shape index: {}]
  %s5 = inlined_call_operand.vmem [shape: bf16[64,32], index: 5, kind: input, shape index: {}]
  %s6 = inlined_call_operand.vmem [shape: f32[1,32], index: 6, kind: input, shape index: {}]
  %s7 = inlined_call_operand.vmem [shape: bf16[32,4], index: 7, kind: input, shape index: {}]
  %s8 = inlined_call_operand.vmem [shape: f32[1,4], index: 8, kind: input, shape index: {}]
  %s9 = inlined_call_operand.vmem [shape: f32[1,128], index: 9, kind: input, shape index: {}]
  %s10 = inlined_call_operand.vmem [shape: f32[1,128], index: 10, kind: input, shape index: {}]
  %s11 = inlined_call_operand.vmem [shape: f32[1,64], index: 11, kind: input, shape index: {}]
  %s12 = inlined_call_operand.vmem [shape: f32[1,64], index: 12, kind: input, shape index: {}]
  %s13 = inlined_call_operand.vmem [shape: f32[1,32], index: 13, kind: input, shape index: {}]
  %s14 = inlined_call_operand.vmem [shape: f32[1,32], index: 14, kind: input, shape index: {}]
  %s15 = inlined_call_operand.vmem [shape: f32[8,4], index: 15, kind: output, shape index: {}]
  %s16 = sld [smem:[#allocation0]]
  $region78: #{tpu_custom_call.1} parent=0
    _
  %s18 = ssub.s32 1, %s16
  %s19 = scalar_select 0, %s18, %s16
  $region1: #{tpu_custom_call.1} parent=0
    #allocation2 [shape = 'u8[4096]{0}', space=vmem, size = 0x1000, scoped, tag = 'input window, operand 0, single buffered']
    #allocation3 [shape = 's32[1]{0}', space=sflag, size = 0x4, scoped, tag = 'scoped memory for tpu_custom_call.1']
    #allocation4 [shape = 'u8[512]{0}', space=vmem, size = 0x400, scoped, tag = 'input window, operand 4, single buffered']
    #allocation5 [shape = 's32[1]{0}', space=sflag, size = 0x4, scoped, tag = 'scoped memory for tpu_custom_call.1']
    %20 = vsyncpa [#allocation3], 0
    %21 = vsyncpa [#allocation5], 0
    // Predicated region
    $region2: #{tpu_custom_call.1} parent=1 // pred_check
      _
    $region3: #{tpu_custom_call.1} parent=1 // pred_check_branch
      %23 = sbr.rel (0) target = $region5
    $region4: #{tpu_custom_call.1} parent=1 // pred_region
      %s25 = ssub.s32 128, 128
      %26 = vsyncadd [#allocation3], %s25
      %s28 = sshll.u32 [#allocation2], 4
      %s29 = int_to_ptr.vmem [resolvable:$true] %s28
      %31 = dma.hbm_to_vmem [thread:$0]  %s0, 128, %s29, [#allocation3]
    $region5: #{tpu_custom_call.1} parent=1 // pred_fallthru
      _
    // Predicated region
    $region6: #{tpu_custom_call.1} parent=1 // pred_check
      _
    $region7: #{tpu_custom_call.1} parent=1 // pred_check_branch
      %33 = sbr.rel (0) target = $region9
    $region8: #{tpu_custom_call.1} parent=1 // pred_region
      _
    $region9: #{tpu_custom_call.1} parent=1 // pred_fallthru
      _
    // Predicated region
    $region10: #{tpu_custom_call.1} parent=1 // pred_check
      _
    $region11: #{tpu_custom_call.1} parent=1 // pred_check_branch
      %35 = sbr.rel (0) target = $region13
    $region12: #{tpu_custom_call.1} parent=1 // pred_region
      _
    $region13: #{tpu_custom_call.1} parent=1 // pred_fallthru
      _
    // Predicated region
    $region14: #{tpu_custom_call.1} parent=1 // pred_check
      _
    $region15: #{tpu_custom_call.1} parent=1 // pred_check_branch
      %37 = sbr.rel (0) target = $region17
    $region16: #{tpu_custom_call.1} parent=1 // pred_region
      _
    $region17: #{tpu_custom_call.1} parent=1 // pred_fallthru
      _
    // Predicated region
    $region18: #{tpu_custom_call.1} parent=1 // pred_check
      _
    $region19: #{tpu_custom_call.1} parent=1 // pred_check_branch
      %39 = sbr.rel (0) target = $region21
    $region20: #{tpu_custom_call.1} parent=1 // pred_region
      %s41 = ssub.s32 16, 16
      %42 = vsyncadd [#allocation5], %s41
      %s44 = sshll.u32 [#allocation4], 4
      %s45 = int_to_ptr.vmem [resolvable:$true] %s44
      %47 = dma.hbm_to_vmem [thread:$0]  %s4, 16, %s45, [#allocation5]
    $region21: #{tpu_custom_call.1} parent=1 // pred_fallthru
      _
    // Predicated region
    $region22: #{tpu_custom_call.1} parent=1 // pred_check
      _
    $region23: #{tpu_custom_call.1} parent=1 // pred_check_branch
      %49 = sbr.rel (0) target = $region25
    $region24: #{tpu_custom_call.1} parent=1 // pred_region
      _
    $region25: #{tpu_custom_call.1} parent=1 // pred_fallthru
      _
    // Predicated region
    $region26: #{tpu_custom_call.1} parent=1 // pred_check
      _
    $region27: #{tpu_custom_call.1} parent=1 // pred_check_branch
      %51 = sbr.rel (0) target = $region29
    $region28: #{tpu_custom_call.1} parent=1 // pred_region
      _
    $region29: #{tpu_custom_call.1} parent=1 // pred_fallthru
      _
    // Predicated region
    $region30: #{tpu_custom_call.1} parent=1 // pred_check
      _
    $region31: #{tpu_custom_call.1} parent=1 // pred_check_branch
      %53 = sbr.rel (0) target = $region33
    $region32: #{tpu_custom_call.1} parent=1 // pred_region
      _
    $region33: #{tpu_custom_call.1} parent=1 // pred_fallthru
      _
    // Predicated region
    $region34: #{tpu_custom_call.1} parent=1 // pred_check
      _
    $region35: #{tpu_custom_call.1} parent=1 // pred_check_branch
      %55 = sbr.rel (0) target = $region37
    $region36: #{tpu_custom_call.1} parent=1 // pred_region
      _
    $region37: #{tpu_custom_call.1} parent=1 // pred_fallthru
      _
    // Predicated region
    $region38: #{tpu_custom_call.1} parent=1 // pred_check
      _
    $region39: #{tpu_custom_call.1} parent=1 // pred_check_branch
      %57 = sbr.rel (0) target = $region41
    $region40: #{tpu_custom_call.1} parent=1 // pred_region
      _
    $region41: #{tpu_custom_call.1} parent=1 // pred_fallthru
      _
    // Predicated region
    $region42: #{tpu_custom_call.1} parent=1 // pred_check
      _
    $region43: #{tpu_custom_call.1} parent=1 // pred_check_branch
      %59 = sbr.rel (0) target = $region45
    $region44: #{tpu_custom_call.1} parent=1 // pred_region
      _
    $region45: #{tpu_custom_call.1} parent=1 // pred_fallthru
      _
    // Predicated region
    $region46: #{tpu_custom_call.1} parent=1 // pred_check
      _
    $region47: #{tpu_custom_call.1} parent=1 // pred_check_branch
      %61 = sbr.rel (0) target = $region49
    $region48: #{tpu_custom_call.1} parent=1 // pred_region
      _
    $region49: #{tpu_custom_call.1} parent=1 // pred_fallthru
      _
    // Predicated region
    $region50: #{tpu_custom_call.1} parent=1 // pred_check
      _
    $region51: #{tpu_custom_call.1} parent=1 // pred_check_branch
      %63 = sbr.rel (0) target = $region53
    $region52: #{tpu_custom_call.1} parent=1 // pred_region
      _
    $region53: #{tpu_custom_call.1} parent=1 // pred_fallthru
      _
    // Predicated region
    $region54: #{tpu_custom_call.1} parent=1 // pred_check
      _
    $region55: #{tpu_custom_call.1} parent=1 // pred_check_branch
      %65 = sbr.rel (0) target = $region57
    $region56: #{tpu_custom_call.1} parent=1 // pred_region
      _
    $region57: #{tpu_custom_call.1} parent=1 // pred_fallthru
      _
    // Predicated region
    $region58: #{tpu_custom_call.1} parent=1 // pred_check
      _
    $region59: #{tpu_custom_call.1} parent=1 // pred_check_branch
      %67 = sbr.rel (0) target = $region61
    $region60: #{tpu_custom_call.1} parent=1 // pred_region
      _
    $region61: #{tpu_custom_call.1} parent=1 // pred_fallthru
      _
    // Predicated region
    $region62: #{tpu_custom_call.1} parent=1 // pred_check
      _
    $region63: #{tpu_custom_call.1} parent=1 // pred_check_branch
      %69 = sbr.rel (0) target = $region65
    $region64: #{tpu_custom_call.1} parent=1 // pred_region
      %70 = dma.done [#allocation3], 128
    $region65: #{tpu_custom_call.1} parent=1 // pred_fallthru
      _
    // Predicated region
    $region66: #{tpu_custom_call.1} parent=1 // pred_check
      _
    $region67: #{tpu_custom_call.1} parent=1 // pred_check_branch
      %72 = sbr.rel (0) target = $region69
    $region68: #{tpu_custom_call.1} parent=1 // pred_region
      %73 = dma.done [#allocation5], 16
    $region69: #{tpu_custom_call.1} parent=1 // pred_fallthru
      _
    %v75 = vld [vmem:[#allocation2] sm:$0xff]
    %v76 = vld [vmem:[%s1] sm:$0xf]
    %v77 = vld [vmem:[%s1 + $0x4] sm:$0xf]
    %v78 = vld [vmem:[%s1 + $0x8] sm:$0xf]
    %v79 = vld [vmem:[%s1 + $0xc] sm:$0xf]
    %v80 = vld [vmem:[%s1 + $0x10] sm:$0xf]
    %v81 = vld [vmem:[%s1 + $0x14] sm:$0xf]
    %v82 = vld [vmem:[%s1 + $0x18] sm:$0xf]
    %v83 = vld [vmem:[%s1 + $0x1c] sm:$0xf]
    %v84 = vld [vmem:[%s1 + $0x20] sm:$0xf]
    %v85 = vld [vmem:[%s1 + $0x24] sm:$0xf]
    %v86 = vld [vmem:[%s1 + $0x28] sm:$0xf]
    %v87 = vld [vmem:[%s1 + $0x2c] sm:$0xf]
    %v88 = vld [vmem:[%s1 + $0x30] sm:$0xf]
    %v89 = vld [vmem:[%s1 + $0x34] sm:$0xf]
    %v90 = vld [vmem:[%s1 + $0x38] sm:$0xf]
    %v91 = vld [vmem:[%s1 + $0x3c] sm:$0xf]
    %v92 = vld [vmem:[%s1 + $0x40] sm:$0xf]
    %v93 = vld [vmem:[%s1 + $0x44] sm:$0xf]
    %v94 = vld [vmem:[%s1 + $0x48] sm:$0xf]
    %v95 = vld [vmem:[%s1 + $0x4c] sm:$0xf]
    %v96 = vld [vmem:[%s1 + $0x50] sm:$0xf]
    %v97 = vld [vmem:[%s1 + $0x54] sm:$0xf]
    %v98 = vld [vmem:[%s1 + $0x58] sm:$0xf]
    %v99 = vld [vmem:[%s1 + $0x5c] sm:$0xf]
    %v100 = vld [vmem:[%s1 + $0x60] sm:$0xf]
    %v101 = vld [vmem:[%s1 + $0x64] sm:$0xf]
    %v102 = vld [vmem:[%s1 + $0x68] sm:$0xf]
    %v103 = vld [vmem:[%s1 + $0x6c] sm:$0xf]
    %v104 = vld [vmem:[%s1 + $0x70] sm:$0xf]
    %v105 = vld [vmem:[%s1 + $0x74] sm:$0xf]
    %v106 = vld [vmem:[%s1 + $0x78] sm:$0xf]
    %v107 = vld [vmem:[%s1 + $0x7c] sm:$0xf]
    %v108 = vld [vmem:[%s2] sm:$0x1]
    %v110 = vlaneseq
    %v111 = vshrl.u32 %v110, 7
    %v112 = vsub.s32 0, %v111
    %v113 = vrot.slane %v108, %v112
    %v116 = vunpack.c.l.b16 %v75
    %v117 = vunpack.c.h.b16 %v75
    %v118 = vpack.c.b16 %v116, %v116
    %v119 = vpack.c.b16 %v117, %v117
    %v154 = vunpack.c.l.b16 %v76
    %v155 = vunpack.c.l.b16 %v77
    %v156 = vunpack.c.l.b16 %v78
    %v157 = vunpack.c.l.b16 %v79
    %v158 = vunpack.c.l.b16 %v80
    %v159 = vunpack.c.l.b16 %v81
    %v160 = vunpack.c.l.b16 %v82
    %v161 = vunpack.c.l.b16 %v83
    %v162 = vunpack.c.l.b16 %v84
    %v163 = vunpack.c.l.b16 %v85
    %v164 = vunpack.c.l.b16 %v86
    %v165 = vunpack.c.l.b16 %v87
    %v166 = vunpack.c.l.b16 %v88
    %v167 = vunpack.c.l.b16 %v89
    %v168 = vunpack.c.l.b16 %v90
    %v169 = vunpack.c.l.b16 %v91
    %v170 = vunpack.c.l.b16 %v92
    %v171 = vunpack.c.l.b16 %v93
    %v172 = vunpack.c.l.b16 %v94
    %v173 = vunpack.c.l.b16 %v95
    %v174 = vunpack.c.l.b16 %v96
    %v175 = vunpack.c.l.b16 %v97
    %v176 = vunpack.c.l.b16 %v98
    %v177 = vunpack.c.l.b16 %v99
    %v178 = vunpack.c.l.b16 %v100
    %v179 = vunpack.c.l.b16 %v101
    %v180 = vunpack.c.l.b16 %v102
    %v181 = vunpack.c.l.b16 %v103
    %v182 = vunpack.c.l.b16 %v104
    %v183 = vunpack.c.l.b16 %v105
    %v184 = vunpack.c.l.b16 %v106
    %v185 = vunpack.c.l.b16 %v107
    %v186 = vpack.c.b16 %v155, %v154
    %v187 = vpack.c.b16 %v157, %v156
    %v188 = vpack.c.b16 %v159, %v158
    %v189 = vpack.c.b16 %v161, %v160
    %v190 = vpack.c.b16 %v163, %v162
    %v191 = vpack.c.b16 %v165, %v164
    %v192 = vpack.c.b16 %v167, %v166
    %v193 = vpack.c.b16 %v169, %v168
    %v194 = vpack.c.b16 %v171, %v170
    %v195 = vpack.c.b16 %v173, %v172
    %v196 = vpack.c.b16 %v175, %v174
    %v197 = vpack.c.b16 %v177, %v176
    %v198 = vpack.c.b16 %v179, %v178
    %v199 = vpack.c.b16 %v181, %v180
    %v200 = vpack.c.b16 %v183, %v182
    %v201 = vpack.c.b16 %v185, %v184
    %218 = vmatprep.subr.bf16.mxu0 0
    %219 = vmatpush1.bf16.msra.mxu0 %v186
    %220 = vmatprep.subr.bf16.mxu0 0
    %221 = vmatpush1.bf16.msra.mxu0 %v187
    %222 = vmatprep.subr.bf16.mxu0 0
    %223 = vmatpush1.bf16.msra.mxu0 %v188
    %224 = vmatprep.subr.bf16.mxu0 0
    %225 = vmatpush1.bf16.msra.mxu0 %v189
    %226 = vmatprep.subr.bf16.mxu0 0
    %227 = vmatpush1.bf16.msra.mxu0 %v190
    %228 = vmatprep.subr.bf16.mxu0 0
    %229 = vmatpush1.bf16.msra.mxu0 %v191
    %230 = vmatprep.subr.bf16.mxu0 0
    %231 = vmatpush1.bf16.msra.mxu0 %v192
    %232 = vmatprep.subr.bf16.mxu0 0
    %233 = vmatpush1.bf16.msra.mxu0 %v193
    %234 = vmatprep.subr.bf16.mxu0 0
    %235 = vmatpush1.bf16.msra.mxu0 %v194
    %236 = vmatprep.subr.bf16.mxu0 0
    %237 = vmatpush1.bf16.msra.mxu0 %v195
    %238 = vmatprep.subr.bf16.mxu0 0
    %239 = vmatpush1.bf16.msra.mxu0 %v196
    %240 = vmatprep.subr.bf16.mxu0 0
    %241 = vmatpush1.bf16.msra.mxu0 %v197
    %242 = vmatprep.subr.bf16.mxu0 0
    %243 = vmatpush1.bf16.msra.mxu0 %v198
    %244 = vmatprep.subr.bf16.mxu0 0
    %245 = vmatpush1.bf16.msra.mxu0 %v199
    %246 = vmatprep.subr.bf16.mxu0 0
    %247 = vmatpush1.bf16.msra.mxu0 %v200
    %248 = vmatprep.subr.bf16.mxu0 0
    %249 = vmatpush1.bf16.msra.mxu0 %v201
    %250 = vmatprep.mubr.bf16.mxu0 %v119
    %251 = vmatmul.mubr.bf16.gmra.mrb[0].mxu0 %v118
    %v252 = vpop.f32.mrb[0].mxu0
    %v253 = vadd.f32 %v113, %v252
    %v254 = vpop.f32.mrb[0].mxu0
    %v255 = vpop.f32.mrb[0].mxu0
    %v256 = vpop.f32.mrb[0].mxu0
    %257 = vdwg.mxu0
    %vm258 = vcmask 1041408
    %v259 = vsel %vm258, %v253, 0.0
    %v260 = vrot.slane %v259, 4
    %v261 = vadd.f32 %v259, %v260
    %v262 = vrot.slane %v261, 2
    %v263 = vadd.f32 %v261, %v262
    %v264 = vrot.slane %v263, 1
    %v265 = vadd.f32 %v263, %v264
    %v266 = vmul.f32 %v253, %v253
    %v267 = vsel %vm258, %v266, 0.0
    %v268 = vrot.slane %v267, 4
    %v269 = vadd.f32 %v267, %v268
    %v270 = vrot.slane %v269, 2
    %v271 = vadd.f32 %v269, %v270
    %v272 = vrot.slane %v271, 1
    %v273 = vadd.f32 %v271, %v272
    %v274 = vmul.f32 %v265, 0.5
    %v275 = vmul.f32 %v273, 0.5
    %v276 = vmul.f32 %v274, %v274
    %v277 = vsub.f32 %v275, %v276
    %v278 = vld [vmem:[%s9] sm:$0x1]
    %v279 = vadd.f32 %v277, 1e-05
    %v280 = vrsqrt.pop %v279
    %v281 = vmul.f32 %v278, %v280
    %v282 = vld [vmem:[%s10] sm:$0x1]
    %v283 = vmul.f32 %v274, %v281
    %v284 = vsub.f32 %v282, %v283
    %v286 = vlaneseq
    %v287 = vshrl.u32 %v286, 7
    %v288 = vsub.s32 0, %v287
    %v289 = vrot.slane %v281, %v288
    %v291 = vmul.f32 %v253, %v289
    %v293 = vlaneseq
    %v294 = vshrl.u32 %v293, 7
    %v295 = vsub.s32 0, %v294
    %v296 = vrot.slane %v284, %v295
    %v298 = vadd.f32 %v291, %v296
    %v299 = vmax.f32 %v298, 0.0
    %v300 = vpack.c.bf16 %v299, %v299
    %v301 = vld [vmem:[%s3] sm:$0xf]
    %v302 = vld [vmem:[%s3 + $0x4] sm:$0xf]
    %v303 = vld [vmem:[%s3 + $0x8] sm:$0xf]
    %v304 = vld [vmem:[%s3 + $0xc] sm:$0xf]
    %v305 = vld [vmem:[%s3 + $0x10] sm:$0xf]
    %v306 = vld [vmem:[%s3 + $0x14] sm:$0xf]
    %v307 = vld [vmem:[%s3 + $0x18] sm:$0xf]
    %v308 = vld [vmem:[%s3 + $0x1c] sm:$0xf]
    %v309 = vld [vmem:[%s3 + $0x20] sm:$0xf]
    %v310 = vld [vmem:[%s3 + $0x24] sm:$0xf]
    %v311 = vld [vmem:[%s3 + $0x28] sm:$0xf]
    %v312 = vld [vmem:[%s3 + $0x2c] sm:$0xf]
    %v313 = vld [vmem:[%s3 + $0x30] sm:$0xf]
    %v314 = vld [vmem:[%s3 + $0x34] sm:$0xf]
    %v315 = vld [vmem:[%s3 + $0x38] sm:$0xf]
    %v316 = vld [vmem:[%s3 + $0x3c] sm:$0xf]
    %v317 = vld [vmem:[#allocation4] sm:$0x1]
    %v319 = vlaneseq
    %v320 = vshrl.u32 %v319, 7
    %v321 = vsub.s32 0, %v320
    %v322 = vrot.slane %v317, %v321
    %v340 = vunpack.c.l.b16 %v301
    %v341 = vunpack.c.l.b16 %v302
    %v342 = vunpack.c.l.b16 %v303
    %v343 = vunpack.c.l.b16 %v304
    %v344 = vunpack.c.l.b16 %v305
    %v345 = vunpack.c.l.b16 %v306
    %v346 = vunpack.c.l.b16 %v307
    %v347 = vunpack.c.l.b16 %v308
    %v348 = vunpack.c.l.b16 %v309
    %v349 = vunpack.c.l.b16 %v310
    %v350 = vunpack.c.l.b16 %v311
    %v351 = vunpack.c.l.b16 %v312
    %v352 = vunpack.c.l.b16 %v313
    %v353 = vunpack.c.l.b16 %v314
    %v354 = vunpack.c.l.b16 %v315
    %v355 = vunpack.c.l.b16 %v316
    %v356 = vpack.c.b16 %v341, %v340
    %v357 = vpack.c.b16 %v343, %v342
    %v358 = vpack.c.b16 %v345, %v344
    %v359 = vpack.c.b16 %v347, %v346
    %v360 = vpack.c.b16 %v349, %v348
    %v361 = vpack.c.b16 %v351, %v350
    %v362 = vpack.c.b16 %v353, %v352
    %v363 = vpack.c.b16 %v355, %v354
    %372 = vmatprep.subr.bf16.mxu0 0
    %373 = vmatpush1.bf16.msra.mxu0 %v356
    %374 = vmatprep.subr.bf16.mxu0 0
    %375 = vmatpush1.bf16.msra.mxu0 %v357
    %376 = vmatprep.subr.bf16.mxu0 0
    %377 = vmatpush1.bf16.msra.mxu0 %v358
    %378 = vmatprep.subr.bf16.mxu0 0
    %379 = vmatpush1.bf16.msra.mxu0 %v359
    %380 = vmatprep.subr.bf16.mxu0 0
    %381 = vmatpush1.bf16.msra.mxu0 %v360
    %382 = vmatprep.subr.bf16.mxu0 0
    %383 = vmatpush1.bf16.msra.mxu0 %v361
    %384 = vmatprep.subr.bf16.mxu0 0
    %385 = vmatpush1.bf16.msra.mxu0 %v362
    %386 = vmatprep.subr.bf16.mxu0 0
    %387 = vmatpush1.bf16.msra.mxu0 %v363
    %388 = vmatprep.subr.bf16.mxu0 0
    %389 = vmatpush1.bf16.msra.mxu0 0
    %390 = vmatprep.subr.bf16.mxu0 0
    %391 = vmatpush1.bf16.msra.mxu0 0
    %392 = vmatprep.subr.bf16.mxu0 0
    %393 = vmatpush1.bf16.msra.mxu0 0
    %394 = vmatprep.subr.bf16.mxu0 0
    %395 = vmatpush1.bf16.msra.mxu0 0
    %396 = vmatprep.subr.bf16.mxu0 0
    %397 = vmatpush1.bf16.msra.mxu0 0
    %398 = vmatprep.subr.bf16.mxu0 0
    %399 = vmatpush1.bf16.msra.mxu0 0
    %400 = vmatprep.subr.bf16.mxu0 0
    %401 = vmatpush1.bf16.msra.mxu0 0
    %402 = vmatprep.subr.bf16.mxu0 0
    %403 = vmatpush1.bf16.msra.mxu0 0
    %404 = vmatprep.mubr.bf16.mxu0 0
    %405 = vmatmul.mubr.bf16.gmra.mrb[0].mxu0 %v300
    %v406 = vpop.f32.mrb[0].mxu0
    %v407 = vadd.f32 %v322, %v406
    %v408 = vpop.f32.mrb[0].mxu0
    %v409 = vpop.f32.mrb[0].mxu0
    %v410 = vpop.f32.mrb[0].mxu0
    %411 = vdwg.mxu0
    %vm412 = vcmask 517120
    %v413 = vsel %vm412, %v407, 0.0
    %v414 = vrot.slane %v413, 4
    %v415 = vadd.f32 %v413, %v414
    %v416 = vrot.slane %v415, 2
    %v417 = vadd.f32 %v415, %v416
    %v418 = vrot.slane %v417, 1
    %v419 = vadd.f32 %v417, %v418
    %v420 = vmul.f32 %v407, %v407
    %v421 = vsel %vm412, %v420, 0.0
    %v422 = vrot.slane %v421, 4
    %v423 = vadd.f32 %v421, %v422
    %v424 = vrot.slane %v423, 2
    %v425 = vadd.f32 %v423, %v424
    %v426 = vrot.slane %v425, 1
    %v427 = vadd.f32 %v425, %v426
    %v428 = vmul.f32 %v419, 0.5
    %v429 = vmul.f32 %v427, 0.5
    %v430 = vmul.f32 %v428, %v428
    %v431 = vsub.f32 %v429, %v430
    %v432 = vld [vmem:[%s11] sm:$0x1]
    %v433 = vadd.f32 %v431, 1e-05
    %v434 = vrsqrt.pop %v433
    %v435 = vmul.f32 %v432, %v434
    %v436 = vld [vmem:[%s12] sm:$0x1]
    %v437 = vmul.f32 %v428, %v435
    %v438 = vsub.f32 %v436, %v437
    %v440 = vlaneseq
    %v441 = vshrl.u32 %v440, 7
    %v442 = vsub.s32 0, %v441
    %v443 = vrot.slane %v435, %v442
    %v445 = vmul.f32 %v407, %v443
    %v447 = vlaneseq
    %v448 = vshrl.u32 %v447, 7
    %v449 = vsub.s32 0, %v448
    %v450 = vrot.slane %v438, %v449
    %v452 = vadd.f32 %v445, %v450
    %v453 = vmax.f32 %v452, 0.0
    %v454 = vpack.c.bf16 %v453, %v453
    %v455 = vld [vmem:[%s5] sm:$0xf]
    %v456 = vld [vmem:[%s5 + $0x4] sm:$0xf]
    %v457 = vld [vmem:[%s5 + $0x8] sm:$0xf]
    %v458 = vld [vmem:[%s5 + $0xc] sm:$0xf]
    %v459 = vld [vmem:[%s5 + $0x10] sm:$0xf]
    %v460 = vld [vmem:[%s5 + $0x14] sm:$0xf]
    %v461 = vld [vmem:[%s5 + $0x18] sm:$0xf]
    %v462 = vld [vmem:[%s5 + $0x1c] sm:$0xf]
    %v463 = vld [vmem:[%s6] sm:$0x1]
    %v465 = vlaneseq
    %v466 = vshrl.u32 %v465, 7
    %v467 = vsub.s32 0, %v466
    %v468 = vrot.slane %v463, %v467
    %v478 = vunpack.c.l.b16 %v455
    %v479 = vunpack.c.l.b16 %v456
    %v480 = vunpack.c.l.b16 %v457
    %v481 = vunpack.c.l.b16 %v458
    %v482 = vunpack.c.l.b16 %v459
    %v483 = vunpack.c.l.b16 %v460
    %v484 = vunpack.c.l.b16 %v461
    %v485 = vunpack.c.l.b16 %v462
    %v486 = vpack.c.b16 %v479, %v478
    %v487 = vpack.c.b16 %v481, %v480
    %v488 = vpack.c.b16 %v483, %v482
    %v489 = vpack.c.b16 %v485, %v484
    %vm494 = vcmask 523264
    %v496 = vsel %vm494, %v454, 0
    %498 = vmatprep.subr.bf16.mxu0 0
    %499 = vmatpush1.bf16.msra.mxu0 %v486
    %500 = vmatprep.subr.bf16.mxu0 0
    %501 = vmatpush1.bf16.msra.mxu0 %v487
    %502 = vmatprep.subr.bf16.mxu0 0
    %503 = vmatpush1.bf16.msra.mxu0 %v488
    %504 = vmatprep.subr.bf16.mxu0 0
    %505 = vmatpush1.bf16.msra.mxu0 %v489
    %506 = vmatprep.subr.bf16.mxu0 0
    %507 = vmatpush1.bf16.msra.mxu0 0
    %508 = vmatprep.subr.bf16.mxu0 0
    %509 = vmatpush1.bf16.msra.mxu0 0
    %510 = vmatprep.subr.bf16.mxu0 0
    %511 = vmatpush1.bf16.msra.mxu0 0
    %512 = vmatprep.subr.bf16.mxu0 0
    %513 = vmatpush1.bf16.msra.mxu0 0
    %514 = vmatprep.subr.bf16.mxu0 0
    %515 = vmatpush1.bf16.msra.mxu0 0
    %516 = vmatprep.subr.bf16.mxu0 0
    %517 = vmatpush1.bf16.msra.mxu0 0
    %518 = vmatprep.subr.bf16.mxu0 0
    %519 = vmatpush1.bf16.msra.mxu0 0
    %520 = vmatprep.subr.bf16.mxu0 0
    %521 = vmatpush1.bf16.msra.mxu0 0
    %522 = vmatprep.subr.bf16.mxu0 0
    %523 = vmatpush1.bf16.msra.mxu0 0
    %524 = vmatprep.subr.bf16.mxu0 0
    %525 = vmatpush1.bf16.msra.mxu0 0
    %526 = vmatprep.subr.bf16.mxu0 0
    %527 = vmatpush1.bf16.msra.mxu0 0
    %528 = vmatprep.subr.bf16.mxu0 0
    %529 = vmatpush1.bf16.msra.mxu0 0
    %530 = vmatprep.mubr.bf16.mxu0 0
    %531 = vmatmul.mubr.bf16.gmra.mrb[0].mxu0 %v496
    %v532 = vpop.f32.mrb[0].mxu0
    %v533 = vadd.f32 %v468, %v532
    %v534 = vpop.f32.mrb[0].mxu0
    %v535 = vpop.f32.mrb[0].mxu0
    %v536 = vpop.f32.mrb[0].mxu0
    %537 = vdwg.mxu0
    %vm538 = vcmask 254976
    %v539 = vsel %vm538, %v533, 0.0
    %v540 = vrot.slane %v539, 4
    %v541 = vadd.f32 %v539, %v540
    %v542 = vrot.slane %v541, 2
    %v543 = vadd.f32 %v541, %v542
    %v544 = vrot.slane %v543, 1
    %v545 = vadd.f32 %v543, %v544
    %v546 = vmul.f32 %v533, %v533
    %v547 = vsel %vm538, %v546, 0.0
    %v548 = vrot.slane %v547, 4
    %v549 = vadd.f32 %v547, %v548
    %v550 = vrot.slane %v549, 2
    %v551 = vadd.f32 %v549, %v550
    %v552 = vrot.slane %v551, 1
    %v553 = vadd.f32 %v551, %v552
    %v554 = vmul.f32 %v545, 0.5
    %v555 = vmul.f32 %v553, 0.5
    %v556 = vmul.f32 %v554, %v554
    %v557 = vsub.f32 %v555, %v556
    %v558 = vld [vmem:[%s13] sm:$0x1]
    %v559 = vadd.f32 %v557, 1e-05
    %v560 = vrsqrt.pop %v559
    %v561 = vmul.f32 %v558, %v560
    %v562 = vld [vmem:[%s14] sm:$0x1]
    %v563 = vmul.f32 %v554, %v561
    %v564 = vsub.f32 %v562, %v563
    %v566 = vlaneseq
    %v567 = vshrl.u32 %v566, 7
    %v568 = vsub.s32 0, %v567
    %v569 = vrot.slane %v561, %v568
    %v571 = vmul.f32 %v533, %v569
    %v573 = vlaneseq
    %v574 = vshrl.u32 %v573, 7
    %v575 = vsub.s32 0, %v574
    %v576 = vrot.slane %v564, %v575
    %v578 = vadd.f32 %v571, %v576
    %v579 = vmax.f32 %v578, 0.0
    %v580 = vpack.c.bf16 %v579, %v579
    %v581 = vld [vmem:[%s7] sm:$0xf]
    %v582 = vld [vmem:[%s7 + $0x4] sm:$0xf]
    %v583 = vld [vmem:[%s7 + $0x8] sm:$0xf]
    %v584 = vld [vmem:[%s7 + $0xc] sm:$0xf]
    %v585 = vld [vmem:[%s8] sm:$0x1]
    %v587 = vlaneseq
    %v588 = vshrl.u32 %v587, 7
    %v589 = vsub.s32 0, %v588
    %v590 = vrot.slane %v585, %v589
    %v596 = vunpack.c.l.b16 %v581
    %v597 = vunpack.c.l.b16 %v582
    %v598 = vunpack.c.l.b16 %v583
    %v599 = vunpack.c.l.b16 %v584
    %v600 = vpack.c.b16 %v597, %v596
    %v601 = vpack.c.b16 %v599, %v598
    %vm604 = vcmask 261120
    %v606 = vsel %vm604, %v580, 0
    %608 = vmatprep.subr.bf16.mxu0 0
    %609 = vmatpush1.bf16.msra.mxu0 %v600
    %610 = vmatprep.subr.bf16.mxu0 0
    %611 = vmatpush1.bf16.msra.mxu0 %v601
    %612 = vmatprep.subr.bf16.mxu0 0
    %613 = vmatpush1.bf16.msra.mxu0 0
    %614 = vmatprep.subr.bf16.mxu0 0
    %615 = vmatpush1.bf16.msra.mxu0 0
    %616 = vmatprep.subr.bf16.mxu0 0
    %617 = vmatpush1.bf16.msra.mxu0 0
    %618 = vmatprep.subr.bf16.mxu0 0
    %619 = vmatpush1.bf16.msra.mxu0 0
    %620 = vmatprep.subr.bf16.mxu0 0
    %621 = vmatpush1.bf16.msra.mxu0 0
    %622 = vmatprep.subr.bf16.mxu0 0
    %623 = vmatpush1.bf16.msra.mxu0 0
    %624 = vmatprep.subr.bf16.mxu0 0
    %625 = vmatpush1.bf16.msra.mxu0 0
    %626 = vmatprep.subr.bf16.mxu0 0
    %627 = vmatpush1.bf16.msra.mxu0 0
    %628 = vmatprep.subr.bf16.mxu0 0
    %629 = vmatpush1.bf16.msra.mxu0 0
    %630 = vmatprep.subr.bf16.mxu0 0
    %631 = vmatpush1.bf16.msra.mxu0 0
    %632 = vmatprep.subr.bf16.mxu0 0
    %633 = vmatpush1.bf16.msra.mxu0 0
    %634 = vmatprep.subr.bf16.mxu0 0
    %635 = vmatpush1.bf16.msra.mxu0 0
    %636 = vmatprep.subr.bf16.mxu0 0
    %637 = vmatpush1.bf16.msra.mxu0 0
    %638 = vmatprep.subr.bf16.mxu0 0
    %639 = vmatpush1.bf16.msra.mxu0 0
    %640 = vmatprep.mubr.bf16.mxu0 0
    %641 = vmatmul.mubr.bf16.gmra.mrb[0].mxu0 %v606
    %v642 = vpop.f32.mrb[0].mxu0
    %v643 = vadd.f32 %v590, %v642
    %v644 = vpop.f32.mrb[0].mxu0
    %v645 = vpop.f32.mrb[0].mxu0
    %v646 = vpop.f32.mrb[0].mxu0
    %647 = vdwg.mxu0
    %vm648 = vcmask 31744
    %649 = vst.msk [vmem:[%s15] sm:$0xff] %vm648, %v643
    // Predicated region
    $region70: #{tpu_custom_call.1} parent=1 // pred_check
      _
    $region71: #{tpu_custom_call.1} parent=1 // pred_check_branch
      %651 = sbr.rel (0) target = $region73
    $region72: #{tpu_custom_call.1} parent=1 // pred_region
      _
    $region73: #{tpu_custom_call.1} parent=1 // pred_fallthru
      _
    // Predicated region
    $region74: #{tpu_custom_call.1} parent=1 // pred_check
      _
    $region75: #{tpu_custom_call.1} parent=1 // pred_check_branch
      %653 = sbr.rel (0) target = $region77
    $region76: #{tpu_custom_call.1} parent=1 // pred_region
      _
    $region77: #{tpu_custom_call.1} parent=1 // pred_fallthru
      _
    %654 = vsyncpa [#allocation3], 1
    %655 = vsyncpa [#allocation5], 1

</llo_original>
